<compile_context>
chip_gen: v7x
topology: tpu7x:2x2x1
jax: 0.10.0
libtpu: 0.0.40
codegen_flags: <defaults>
</compile_context>

<pallas_src>
import jax
import jax.numpy as jnp
from jax.experimental import pallas as pl
from jax.experimental.pallas import tpu as pltpu

EPS = 1e-5          # nn.GroupNorm default
_LANE = 128
_SUBLANE = 8


def _group_onehots(embed, ngroup, pack):
    """Channel<->group one-hot selectors for the `pack`-replicated lane layout."""
    cg = embed // ngroup
    lane_group = (jnp.arange(pack * embed) % embed) // cg               # (L,)
    gid = jnp.arange(ngroup)
    sg_r = (lane_group[:, None] == gid[None, :]).astype(jnp.float32)    # (L, G)  reduce
    return sg_r, sg_r.T                                                 # + (G, L) broadcast


def _batch_onehots(tb, rows_per_batch):
    """Row<->batch one-hot selectors for one (tb * rows_per_batch)-row block."""
    m = tb * rows_per_batch
    row_batch = jnp.arange(m) // rows_per_batch                         # (m,)
    bid = jnp.arange(tb)
    bs_b = (row_batch[:, None] == bid[None, :]).astype(jnp.float32)     # (m, tb) broadcast
    return bs_b.T, bs_b                                                 # (tb, m) reduce, (m, tb)


def _pack_param_slab(conv_w, conv_b, gn_w, gn_b, pack, sg_b):
    """Single lane-dense parameter slab: blockdiag conv weights + folded bias row +
    tiled gamma/beta + the group->channel broadcast one-hot.  One resident DMA stream."""
    E, Cin = conv_w.shape
    L = pack * E
    K = pack * Cin + 1
    wt = conv_w.T.astype(jnp.float32)                                   # (Cin, E)
    w_big = jnp.zeros((K, L), jnp.float32)
    for p in range(pack):
        w_big = w_big.at[p * Cin:(p + 1) * Cin, p * E:(p + 1) * E].set(wt)
    w_big = w_big.at[K - 1, :].set(jnp.tile(conv_b.astype(jnp.float32), pack))  # ones-col bias
    gamma = jnp.tile(gn_w.astype(jnp.float32), pack)[None, :]
    beta = jnp.tile(gn_b.astype(jnp.float32), pack)[None, :]
    return jnp.concatenate([w_big, gamma, beta, sg_b], axis=0)          # (K+2+G, L)


def _make_kernel(k_dim, ngroup, inv_cnt):
    K, G = k_dim, ngroup

    def kernel(x_ref, slab_ref, sgr_ref, bsr_ref, bsb_ref, o_ref):
        x = x_ref[...].astype(jnp.float32)          # (m, K)   packed keypoints + ones column
        p = slab_ref[...]                           # (K+2+G, L) resident parameter slab
        w = p[0:K, :]                               # (K, L)   blockdiag conv weight + bias row
        gamma = p[K:K + 1, :]                       # (1, L)
        beta = p[K + 1:K + 2, :]                    # (1, L)
        sg_b = p[K + 2:K + 2 + G, :]                # (G, L)   group  -> channels broadcast
        sg_r = sgr_ref[...]                         # (L, G)   channel -> group   reduce
        bs_r = bsr_ref[...]                         # (tb, m)  rows   -> batch    reduce
        bs_b = bsb_ref[...]                         # (m, tb)  batch  -> rows     broadcast
        f32 = jnp.float32

        # Conv1d(kernel_size=1) + bias (folded ones column): one MXU push over all rows.
        co = jnp.dot(x, w, preferred_element_type=f32)                       # (m, L)

        # Segmented GroupNorm statistics via exact one-hot matmuls (MXU has huge slack here).
        # NOTE: switch these dots to precision=jax.lax.Precision.HIGHEST if tighter f32
        # accuracy is ever required at large activation magnitudes.
        grp = jnp.dot(co, sg_r, preferred_element_type=f32)                  # (m, G)
        mean_bg = jnp.dot(bs_r, grp, preferred_element_type=f32) * inv_cnt   # (tb, G)
        mean_rows = jnp.dot(mean_bg, sg_b, preferred_element_type=f32)       # (tb, L)
        mean = jnp.dot(bs_b, mean_rows, preferred_element_type=f32)          # (m, L)
        cent = co - mean

        grp2 = jnp.dot(cent * cent, sg_r, preferred_element_type=f32)        # (m, G)
        var_bg = jnp.dot(bs_r, grp2, preferred_element_type=f32) * inv_cnt   # (tb, G)
        var_rows = jnp.dot(var_bg, sg_b, preferred_element_type=f32)         # (tb, L)
        # rsqrt (EUP) + gamma on the small per-batch slab, then broadcast to rows on the MXU.
        scale_rows = jax.lax.rsqrt(var_rows + EPS) * gamma                    # (tb, L)
        scale = jnp.dot(bs_b, scale_rows, preferred_element_type=f32)         # (m, L)

        o_ref[...] = (cent * scale + beta).astype(o_ref.dtype)

    return kernel


def _detect_num_shards(batch):
    """v7x has 2 TensorCores per chip -> 2 parallel shards; v5e/v6e -> 1 (grid is serial)."""
    n = 1
    try:
        info = pltpu.get_tpu_info()
        for name in ("num_tensorcores", "tensorcores_per_chip", "tensor_core_count",
                     "num_cores", "cores_per_chip", "core_count"):
            v = getattr(info, name, None)
            if v:
                n = int(v)
                break
    except Exception:
        n = 1
    return max(1, min(n, 2, batch))


def keypoint_embedding(keypoints, conv_w, conv_b, gn_w, gn_b, *, ngroup=4,
                       block_rows=1024, num_shards=None):
    """Pallas TPU forward of KeypointEmbedding.

    keypoints: (B, N, Cin); conv_w: (E, Cin) (Conv1d weight with k=1 squeezed);
    conv_b, gn_w, gn_b: (E,).  Returns (B, N, E).
    """
    B, N, Cin = keypoints.shape
    E = conv_w.shape[0]
    assert conv_w.shape == (E, Cin)
    assert E % ngroup == 0, "embed_dim must be divisible by ngroup"

    # --- lane-dense packing: `pack` consecutive keypoints per row (E=64 -> pack=2 -> 128 lanes)
    pack = _LANE // E if (E < _LANE and _LANE % E == 0) else 1
    while pack > 1 and N % pack != 0:
        pack //= 2
    n_rows = N // pack                      # packed rows per batch element
    L = pack * E                            # output lanes per row (128 for the defaults)
    K = pack * Cin + 1                      # inputs per row (+1 = ones column folding the bias)
    total_rows = B * n_rows
    inv_cnt = 1.0 / float(N * (E // ngroup))

    # --- tile selection: few fat steps; `num_shards` parallel shards for v7x's 2 TensorCores
    if num_shards is None:
        num_shards = _detect_num_shards(B)
    num_shards = max(1, min(int(num_shards), B))
    max_tb = max(1, block_rows // max(1, n_rows))          # VMEM-driven cap on batches/step
    target = min(max(1, -(-B // num_shards)), max_tb, B)
    tb = None
    for cand in range(target, 0, -1):
        if B % cand:
            continue
        if cand == B or (cand * n_rows) % _SUBLANE == 0:   # block sublane dim must be 8-aligned
            tb = cand
            break
    if tb is None:
        tb = B                                             # grid=(1,): block == full array (legal)
    grid = (B // tb,)
    m = tb * n_rows                                        # rows per grid step

    # --- host-side packing (done once, outside the kernel)
    x_pack = keypoints.reshape(B, n_rows, pack * Cin).astype(jnp.float32)
    ones = jnp.ones((B, n_rows, 1), jnp.float32)
    x2d = jnp.concatenate([x_pack, ones], axis=-1).reshape(total_rows, K)

    sg_r, sg_b = _group_onehots(E, ngroup, pack)
    slab = _pack_param_slab(conv_w, conv_b, gn_w, gn_b, pack, sg_b)
    bs_r, bs_b = _batch_onehots(tb, n_rows)

    # --- explicit VMEM budget: in/out blocks double-buffered + resident constants + headroom
    #     for ~6 live (m, L) f32 intermediates; request it via vmem_limit_bytes (capped at the
    #     32 MiB that is safe on every generation, well under v7x's 64 MiB physical).
    pad = lambda r, c: (-(-r // _SUBLANE) * _SUBLANE) * (-(-c // _LANE) * _LANE) * 4
    vmem_est = (2 * (pad(m, K) + pad(m, L))
                + 2 * (pad(*slab.shape) + pad(*sg_r.shape) + pad(*bs_r.shape) + pad(*bs_b.shape))
                + 6 * pad(m, L))
    vmem_limit = int(min(max(vmem_est + (4 << 20), 16 << 20), 32 << 20))

    kernel = _make_kernel(K, ngroup, inv_cnt)
    out2d = pl.pallas_call(
        kernel,
        out_shape=jax.ShapeDtypeStruct((total_rows, L), keypoints.dtype),
        grid=grid,
        in_specs=[
            pl.BlockSpec((m, K), lambda i: (i, 0)),        # activations (streamed per step)
            pl.BlockSpec(slab.shape, lambda i: (0, 0)),    # parameter slab (resident)
            pl.BlockSpec(sg_r.shape, lambda i: (0, 0)),    # channel->group one-hot (resident)
            pl.BlockSpec(bs_r.shape, lambda i: (0, 0)),    # rows->batch one-hot (resident)
            pl.BlockSpec(bs_b.shape, lambda i: (0, 0)),    # batch->rows one-hot (resident)
        ],
        out_specs=pl.BlockSpec((m, L), lambda i: (i, 0)),  # lane-dense (128-wide) output
        compiler_params=pltpu.CompilerParams(
            dimension_semantics=("parallel",),
            vmem_limit_bytes=vmem_limit,
        ),
    )(x2d, slab, sg_r, bs_r, bs_b)

    return out2d.reshape(B, n_rows, pack, E).reshape(B, N, E)


def keypoint_embedding_ref(keypoints, conv_w, conv_b, gn_w, gn_b, ngroup=4):
    """Pure-JAX reference matching the PyTorch module."""
    B, N, Cin = keypoints.shape
    E = conv_w.shape[0]
    co = jnp.einsum("bnc,ec->bne", keypoints, conv_w) + conv_b           # Conv1d, k=1
    cg = E // ngroup
    cog = co.reshape(B, N, ngroup, cg)
    mu = jnp.mean(cog, axis=(1, 3), keepdims=True)
    var = jnp.mean((cog - mu) ** 2, axis=(1, 3), keepdims=True)
    y = (cog - mu) / jnp.sqrt(var + EPS)
    return y.reshape(B, N, E) * gn_w + gn_b


if __name__ == "__main__":
    key = jax.random.PRNGKey(0)
    k1, k2, k3, k4, k5 = jax.random.split(key, 5)

    # module defaults: in_channels=2, embed_dim=64, ngroup=4; small batch/keypoint counts
    B, N, CIN, E, G = 8, 16, 2, 64, 4
    keypoints = jax.random.normal(k1, (B, N, CIN), jnp.float32)
    conv_w = 0.2 * jax.random.normal(k2, (E, CIN), jnp.float32)
    conv_b = 0.1 * jax.random.normal(k3, (E,), jnp.float32)
    gn_w = 1.0 + 0.05 * jax.random.normal(k4, (E,), jnp.float32)
    gn_b = 0.05 * jax.random.normal(k5, (E,), jnp.float32)

    out = keypoint_embedding(keypoints, conv_w, conv_b, gn_w, gn_b, ngroup=G)
    out = jax.block_until_ready(out)

    ref = keypoint_embedding_ref(keypoints, conv_w, conv_b, gn_w, gn_b, ngroup=G)
    assert out.shape == (B, N, E)
    err = float(jnp.max(jnp.abs(out - ref)))
    assert jnp.allclose(out, ref, atol=2e-4, rtol=2e-4), f"mismatch vs reference: {err}"

    print("KERNEL_OK")
</pallas_src>

<mosaic_0001>
module attributes {stable_mosaic.version = 11 : i64} {
  func.func @kernel(%arg0: i32, %arg1: memref<64x5xf32, #tpu.memory_space<vmem>>, %arg2: memref<11x128xf32, #tpu.memory_space<vmem>>, %arg3: memref<128x4xf32, #tpu.memory_space<vmem>>, %arg4: memref<8x64xf32, #tpu.memory_space<vmem>>, %arg5: memref<64x8xf32, #tpu.memory_space<vmem>>, %arg6: memref<64x128xf32, #tpu.memory_space<vmem>>) attributes {dimension_semantics = [#tpu.dimension_semantics<parallel>], iteration_bounds = array<i64: 1>, scalar_prefetch = 0 : i64, scratch_operands = 0 : i64, tpu.core_type = #tpu.core_type<tc>, window_params = [{transform_indices = @transform_0, window_bounds = array<i64: 64, 5>}, {pipeline_mode = #tpu.pipeline_mode<synchronous>, transform_indices = @transform_1, window_bounds = array<i64: 11, 128>}, {pipeline_mode = #tpu.pipeline_mode<synchronous>, transform_indices = @transform_2, window_bounds = array<i64: 128, 4>}, {pipeline_mode = #tpu.pipeline_mode<synchronous>, transform_indices = @transform_3, window_bounds = array<i64: 8, 64>}, {pipeline_mode = #tpu.pipeline_mode<synchronous>, transform_indices = @transform_4, window_bounds = array<i64: 64, 8>}, {transform_indices = @transform_5, window_bounds = array<i64: 64, 128>}]} {
    %c0 = arith.constant 0 : index
    %c0_0 = arith.constant 0 : index
    %0 = vector.load %arg1[%c0, %c0_0] : memref<64x5xf32, #tpu.memory_space<vmem>>, vector<64x5xf32>
    %c0_1 = arith.constant 0 : index
    %c0_2 = arith.constant 0 : index
    %1 = vector.load %arg2[%c0_1, %c0_2] : memref<11x128xf32, #tpu.memory_space<vmem>>, vector<11x128xf32>
    %2 = vector.extract_strided_slice %1 {offsets = [0, 0], sizes = [5, 128], strides = [1, 1]} : vector<11x128xf32> to vector<5x128xf32>
    %3 = vector.extract_strided_slice %1 {offsets = [5, 0], sizes = [1, 128], strides = [1, 1]} : vector<11x128xf32> to vector<1x128xf32>
    %4 = vector.extract_strided_slice %1 {offsets = [6, 0], sizes = [1, 128], strides = [1, 1]} : vector<11x128xf32> to vector<1x128xf32>
    %5 = vector.extract_strided_slice %1 {offsets = [7, 0], sizes = [4, 128], strides = [1, 1]} : vector<11x128xf32> to vector<4x128xf32>
    %c0_3 = arith.constant 0 : index
    %c0_4 = arith.constant 0 : index
    %6 = vector.load %arg3[%c0_3, %c0_4] : memref<128x4xf32, #tpu.memory_space<vmem>>, vector<128x4xf32>
    %c0_5 = arith.constant 0 : index
    %c0_6 = arith.constant 0 : index
    %7 = vector.load %arg4[%c0_5, %c0_6] : memref<8x64xf32, #tpu.memory_space<vmem>>, vector<8x64xf32>
    %c0_7 = arith.constant 0 : index
    %c0_8 = arith.constant 0 : index
    %8 = vector.load %arg5[%c0_7, %c0_8] : memref<64x8xf32, #tpu.memory_space<vmem>>, vector<64x8xf32>
    %cst = arith.constant dense<0.000000e+00> : vector<64x128xf32>
    %9 = tpu.matmul %0, %2, %cst {dimension_numbers = #tpu.dot_dimension_numbers<[1], [0], [0], [1], [0, 0, 1, 1], [], []>} : vector<64x5xf32>, vector<5x128xf32>, vector<64x128xf32> -> vector<64x128xf32>
    %cst_9 = arith.constant dense<0.000000e+00> : vector<64x4xf32>
    %10 = tpu.matmul %9, %6, %cst_9 {dimension_numbers = #tpu.dot_dimension_numbers<[1], [0], [0], [1], [0, 0, 1, 1], [], []>} : vector<64x128xf32>, vector<128x4xf32>, vector<64x4xf32> -> vector<64x4xf32>
    %cst_10 = arith.constant dense<0.000000e+00> : vector<8x4xf32>
    %11 = tpu.matmul %7, %10, %cst_10 {dimension_numbers = #tpu.dot_dimension_numbers<[1], [0], [0], [1], [0, 0, 1, 1], [], []>} : vector<8x64xf32>, vector<64x4xf32>, vector<8x4xf32> -> vector<8x4xf32>
    %cst_11 = arith.constant 3.906250e-03 : f32
    %12 = vector.broadcast %cst_11 : f32 to vector<8x4xf32>
    %13 = arith.mulf %11, %12 : vector<8x4xf32>
    %cst_12 = arith.constant dense<0.000000e+00> : vector<8x128xf32>
    %14 = tpu.matmul %13, %5, %cst_12 {dimension_numbers = #tpu.dot_dimension_numbers<[1], [0], [0], [1], [0, 0, 1, 1], [], []>} : vector<8x4xf32>, vector<4x128xf32>, vector<8x128xf32> -> vector<8x128xf32>
    %cst_13 = arith.constant dense<0.000000e+00> : vector<64x128xf32>
    %15 = tpu.matmul %8, %14, %cst_13 {dimension_numbers = #tpu.dot_dimension_numbers<[1], [0], [0], [1], [0, 0, 1, 1], [], []>} : vector<64x8xf32>, vector<8x128xf32>, vector<64x128xf32> -> vector<64x128xf32>
    %16 = arith.subf %9, %15 : vector<64x128xf32>
    %17 = arith.mulf %16, %16 : vector<64x128xf32>
    %cst_14 = arith.constant dense<0.000000e+00> : vector<64x4xf32>
    %18 = tpu.matmul %17, %6, %cst_14 {dimension_numbers = #tpu.dot_dimension_numbers<[1], [0], [0], [1], [0, 0, 1, 1], [], []>} : vector<64x128xf32>, vector<128x4xf32>, vector<64x4xf32> -> vector<64x4xf32>
    %cst_15 = arith.constant dense<0.000000e+00> : vector<8x4xf32>
    %19 = tpu.matmul %7, %18, %cst_15 {dimension_numbers = #tpu.dot_dimension_numbers<[1], [0], [0], [1], [0, 0, 1, 1], [], []>} : vector<8x64xf32>, vector<64x4xf32>, vector<8x4xf32> -> vector<8x4xf32>
    %cst_16 = arith.constant 3.906250e-03 : f32
    %20 = vector.broadcast %cst_16 : f32 to vector<8x4xf32>
    %21 = arith.mulf %19, %20 : vector<8x4xf32>
    %cst_17 = arith.constant dense<0.000000e+00> : vector<8x128xf32>
    %22 = tpu.matmul %21, %5, %cst_17 {dimension_numbers = #tpu.dot_dimension_numbers<[1], [0], [0], [1], [0, 0, 1, 1], [], []>} : vector<8x4xf32>, vector<4x128xf32>, vector<8x128xf32> -> vector<8x128xf32>
    %cst_18 = arith.constant 9.99999974E-6 : f32
    %23 = vector.broadcast %cst_18 : f32 to vector<8x128xf32>
    %24 = arith.addf %22, %23 : vector<8x128xf32>
    %25 = math.rsqrt %24 : vector<8x128xf32>
    %26 = vector.broadcast %3 : vector<1x128xf32> to vector<8x128xf32>
    %27 = arith.mulf %25, %26 : vector<8x128xf32>
    %cst_19 = arith.constant dense<0.000000e+00> : vector<64x128xf32>
    %28 = tpu.matmul %8, %27, %cst_19 {dimension_numbers = #tpu.dot_dimension_numbers<[1], [0], [0], [1], [0, 0, 1, 1], [], []>} : vector<64x8xf32>, vector<8x128xf32>, vector<64x128xf32> -> vector<64x128xf32>
    %29 = arith.mulf %16, %28 : vector<64x128xf32>
    %30 = vector.broadcast %4 : vector<1x128xf32> to vector<64x128xf32>
    %31 = arith.addf %29, %30 : vector<64x128xf32>
    %c0_20 = arith.constant 0 : index
    %c0_21 = arith.constant 0 : index
    %32 = vector.load %arg6[%c0_20, %c0_21] : memref<64x128xf32, #tpu.memory_space<vmem>>, vector<64x128xf32>
    tpu.vector_store %arg6[%c0_20, %c0_21], %31 {strides = array<i32>} : memref<64x128xf32, #tpu.memory_space<vmem>>, vector<64x128xf32>,
    return
  }
  func.func @transform_0(%arg0: i32) -> (i32, i32) {
    %c0_i32 = arith.constant 0 : i32
    %c0_i32_0 = arith.constant 0 : i32
    return %arg0, %c0_i32 : i32, i32
  }
  func.func @transform_1(%arg0: i32) -> (i32, i32) {
    %c0_i32 = arith.constant 0 : i32
    %c0_i32_0 = arith.constant 0 : i32
    %c0_i32_1 = arith.constant 0 : i32
    return %c0_i32, %c0_i32_0 : i32, i32
  }
  func.func @transform_2(%arg0: i32) -> (i32, i32) {
    %c0_i32 = arith.constant 0 : i32
    %c0_i32_0 = arith.constant 0 : i32
    %c0_i32_1 = arith.constant 0 : i32
    return %c0_i32, %c0_i32_0 : i32, i32
  }
  func.func @transform_3(%arg0: i32) -> (i32, i32) {
    %c0_i32 = arith.constant 0 : i32
    %c0_i32_0 = arith.constant 0 : i32
    %c0_i32_1 = arith.constant 0 : i32
    return %c0_i32, %c0_i32_0 : i32, i32
  }
  func.func @transform_4(%arg0: i32) -> (i32, i32) {
    %c0_i32 = arith.constant 0 : i32
    %c0_i32_0 = arith.constant 0 : i32
    %c0_i32_1 = arith.constant 0 : i32
    return %c0_i32, %c0_i32_0 : i32, i32
  }
  func.func @transform_5(%arg0: i32) -> (i32, i32) {
    %c0_i32 = arith.constant 0 : i32
    %c0_i32_0 = arith.constant 0 : i32
    return %arg0, %c0_i32 : i32, i32
  }
}

</mosaic_0001>

<llo_original>
// kernel: tpu_custom_call.1
$region0: #{tpu_custom_call.1}
  #allocation0 [shape = 'u32[]', space=smem, size = 0x4, offset = 0x4, fixed_abs, tag = 'smem constant byte address 0x4 - core index']
  #allocation1 [shape = 'u32[144,128]{1,0:T(1,128)}', space=vmem, size = 0x12000, scoped, tag = 'internal scratch']
  %s0 = inlined_call_operand.vmem [shape: f32[64,5], index: 0, kind: input, shape index: {}]
  %s1 = inlined_call_operand.vmem [shape: f32[11,128], index: 1, kind: input, shape index: {}]
  %s2 = inlined_call_operand.vmem [shape: f32[128,4], index: 2, kind: input, shape index: {}]
  %s3 = inlined_call_operand.vmem [shape: f32[8,64], index: 3, kind: input, shape index: {}]
  %s4 = inlined_call_operand.vmem [shape: f32[64,8], index: 4, kind: input, shape index: {}]
  %s5 = inlined_call_operand.hbm [shape: f32[64,128], index: 5, kind: output, shape index: {}]
  %s6 = sld [smem:[#allocation0]]
  $region30: #{tpu_custom_call.1} parent=0
    _
  %s8 = ssub.s32 1, %s6
  %s9 = scalar_select 0, %s8, %s6
  $region1: #{tpu_custom_call.1} parent=0
    #allocation2 [shape = 'u8[32768]{0}', space=vmem, size = 0x8000, scoped, tag = 'output window, operand 0, single buffered']
    #allocation3 [shape = 's32[1]{0}', space=sflag, size = 0x4, scoped, tag = 'scoped memory for tpu_custom_call.1']
    %10 = vsyncpa [#allocation3], 0
    // Predicated region
    $region2: #{tpu_custom_call.1} parent=1 // pred_check
      _
    $region3: #{tpu_custom_call.1} parent=1 // pred_check_branch
      %12 = sbr.rel (0) target = $region5
    $region4: #{tpu_custom_call.1} parent=1 // pred_region
      _
    $region5: #{tpu_custom_call.1} parent=1 // pred_fallthru
      _
    // Predicated region
    $region6: #{tpu_custom_call.1} parent=1 // pred_check
      _
    $region7: #{tpu_custom_call.1} parent=1 // pred_check_branch
      %14 = sbr.rel (0) target = $region9
    $region8: #{tpu_custom_call.1} parent=1 // pred_region
      _
    $region9: #{tpu_custom_call.1} parent=1 // pred_fallthru
      _
    // Predicated region
    $region10: #{tpu_custom_call.1} parent=1 // pred_check
      _
    $region11: #{tpu_custom_call.1} parent=1 // pred_check_branch
      %16 = sbr.rel (0) target = $region13
    $region12: #{tpu_custom_call.1} parent=1 // pred_region
      _
    $region13: #{tpu_custom_call.1} parent=1 // pred_fallthru
      _
    // Predicated region
    $region14: #{tpu_custom_call.1} parent=1 // pred_check
      _
    $region15: #{tpu_custom_call.1} parent=1 // pred_check_branch
      %18 = sbr.rel (0) target = $region17
    $region16: #{tpu_custom_call.1} parent=1 // pred_region
      _
    $region17: #{tpu_custom_call.1} parent=1 // pred_fallthru
      _
    // Predicated region
    $region18: #{tpu_custom_call.1} parent=1 // pred_check
      _
    $region19: #{tpu_custom_call.1} parent=1 // pred_check_branch
      %20 = sbr.rel (0) target = $region21
    $region20: #{tpu_custom_call.1} parent=1 // pred_region
      _
    $region21: #{tpu_custom_call.1} parent=1 // pred_fallthru
      _
    %v21 = vld [vmem:[%s0] sm:$0xff]
    %v22 = vld [vmem:[%s0 + $0x8] sm:$0xff]
    %v23 = vld [vmem:[%s0 + $0x10] sm:$0xff]
    %v24 = vld [vmem:[%s0 + $0x18] sm:$0xff]
    %v25 = vld [vmem:[%s0 + $0x20] sm:$0xff]
    %v26 = vld [vmem:[%s0 + $0x28] sm:$0xff]
    %v27 = vld [vmem:[%s0 + $0x30] sm:$0xff]
    %v28 = vld [vmem:[%s0 + $0x38] sm:$0xff]
    %v29 = vld [vmem:[%s1] sm:$0xff]
    %v30 = vld [vmem:[%s1 + $0x8] sm:$0x7]
    %v31 = vld [vmem:[%s2] sm:$0xff]
    %v32 = vld [vmem:[%s2 + $0x8] sm:$0xff]
    %v33 = vld [vmem:[%s2 + $0x10] sm:$0xff]
    %v34 = vld [vmem:[%s2 + $0x18] sm:$0xff]
    %v35 = vld [vmem:[%s2 + $0x20] sm:$0xff]
    %v36 = vld [vmem:[%s2 + $0x28] sm:$0xff]
    %v37 = vld [vmem:[%s2 + $0x30] sm:$0xff]
    %v38 = vld [vmem:[%s2 + $0x38] sm:$0xff]
    %v39 = vld [vmem:[%s2 + $0x40] sm:$0xff]
    %v40 = vld [vmem:[%s2 + $0x48] sm:$0xff]
    %v41 = vld [vmem:[%s2 + $0x50] sm:$0xff]
    %v42 = vld [vmem:[%s2 + $0x58] sm:$0xff]
    %v43 = vld [vmem:[%s2 + $0x60] sm:$0xff]
    %v44 = vld [vmem:[%s2 + $0x68] sm:$0xff]
    %v45 = vld [vmem:[%s2 + $0x70] sm:$0xff]
    %v46 = vld [vmem:[%s2 + $0x78] sm:$0xff]
    %v47 = vld [vmem:[%s3] sm:$0xff]
    %v48 = vld [vmem:[%s4] sm:$0xff]
    %v49 = vld [vmem:[%s4 + $0x8] sm:$0xff]
    %v50 = vld [vmem:[%s4 + $0x10] sm:$0xff]
    %v51 = vld [vmem:[%s4 + $0x18] sm:$0xff]
    %v52 = vld [vmem:[%s4 + $0x20] sm:$0xff]
    %v53 = vld [vmem:[%s4 + $0x28] sm:$0xff]
    %v54 = vld [vmem:[%s4 + $0x30] sm:$0xff]
    %v55 = vld [vmem:[%s4 + $0x38] sm:$0xff]
    %vm56 = vcmask 39936
    %v58 = vsel %vm56, %v21, 0
    %v61 = vsel %vm56, %v22, 0
    %v64 = vsel %vm56, %v23, 0
    %v67 = vsel %vm56, %v24, 0
    %v70 = vsel %vm56, %v25, 0
    %v73 = vsel %vm56, %v26, 0
    %v76 = vsel %vm56, %v27, 0
    %v79 = vsel %vm56, %v28, 0
    %vm81 = vcmask 1044480
    %v83 = vsel %vm81, %v29, 0
    %85 = vmatprep.subr.mxu0 0.0
    %86 = vmatpush1.msra.mxu0 %v83
    %87 = vmatprep.subr.mxu0 0.0
    %88 = vmatpush1.msra.mxu0 0.0
    %89 = vmatprep.subr.mxu0 0.0
    %90 = vmatpush1.msra.mxu0 0.0
    %91 = vmatprep.subr.mxu0 0.0
    %92 = vmatpush1.msra.mxu0 0.0
    %93 = vmatprep.subr.mxu0 0.0
    %94 = vmatpush1.msra.mxu0 0.0
    %95 = vmatprep.subr.mxu0 0.0
    %96 = vmatpush1.msra.mxu0 0.0
    %97 = vmatprep.subr.mxu0 0.0
    %98 = vmatpush1.msra.mxu0 0.0
    %99 = vmatprep.subr.mxu0 0.0
    %100 = vmatpush1.msra.mxu0 0.0
    %101 = vmatprep.subr.mxu0 0.0
    %102 = vmatpush1.msra.mxu0 0.0
    %103 = vmatprep.subr.mxu0 0.0
    %104 = vmatpush1.msra.mxu0 0.0
    %105 = vmatprep.subr.mxu0 0.0
    %106 = vmatpush1.msra.mxu0 0.0
    %107 = vmatprep.subr.mxu0 0.0
    %108 = vmatpush1.msra.mxu0 0.0
    %109 = vmatprep.subr.mxu0 0.0
    %110 = vmatpush1.msra.mxu0 0.0
    %111 = vmatprep.subr.mxu0 0.0
    %112 = vmatpush1.msra.mxu0 0.0
    %113 = vmatprep.subr.mxu0 0.0
    %114 = vmatpush1.msra.mxu0 0.0
    %115 = vmatprep.subr.mxu0 0.0
    %116 = vmatpush1.msra.mxu0 0.0
    %117 = vmatprep.subr.mxu0 0.0
    %118 = vmatpush1.msra.mxu0 0.0
    %119 = vmatprep.subr.mxu0 0.0
    %120 = vmatpush1.msra.mxu0 0.0
    %121 = vmatprep.subr.mxu0 0.0
    %122 = vmatpush1.msra.mxu0 0.0
    %123 = vmatprep.subr.mxu0 0.0
    %124 = vmatpush1.msra.mxu0 0.0
    %125 = vmatprep.subr.mxu0 0.0
    %126 = vmatpush1.msra.mxu0 0.0
    %127 = vmatprep.subr.mxu0 0.0
    %128 = vmatpush1.msra.mxu0 0.0
    %129 = vmatprep.subr.mxu0 0.0
    %130 = vmatpush1.msra.mxu0 0.0
    %131 = vmatprep.subr.mxu0 0.0
    %132 = vmatpush1.msra.mxu0 0.0
    %133 = vmatprep.subr.mxu0 0.0
    %134 = vmatpush1.msra.mxu0 0.0
    %135 = vmatprep.subr.mxu0 0.0
    %136 = vmatpush1.msra.mxu0 0.0
    %137 = vmatprep.subr.mxu0 0.0
    %138 = vmatpush1.msra.mxu0 0.0
    %139 = vmatprep.subr.mxu0 0.0
    %140 = vmatpush1.msra.mxu0 0.0
    %141 = vmatprep.subr.mxu0 0.0
    %142 = vmatpush1.msra.mxu0 0.0
    %143 = vmatprep.subr.mxu0 0.0
    %144 = vmatpush1.msra.mxu0 0.0
    %145 = vmatprep.subr.mxu0 0.0
    %146 = vmatpush1.msra.mxu0 0.0
    %147 = vmatprep.subr.mxu0 0.0
    %148 = vmatpush1.msra.mxu0 0.0
    %149 = vmatprep.mubr.f32.mxu0 0.0
    %150 = vmatmul.mubr.f32.gmra.mrb[0].mxu0 %v58
    %v151 = vpop.f32.mrb[0].mxu0
    %v152 = vadd.f32 0.0, %v151
    %v153 = vpop.f32.mrb[0].mxu0
    %154 = vmatprep.mubr.f32.mxu0 0.0
    %155 = vmatmul.mubr.f32.gmra.mrb[0].mxu0 %v61
    %v156 = vpop.f32.mrb[0].mxu0
    %v157 = vadd.f32 0.0, %v156
    %v158 = vpop.f32.mrb[0].mxu0
    %159 = vmatprep.mubr.f32.mxu0 0.0
    %160 = vmatmul.mubr.f32.gmra.mrb[0].mxu0 %v64
    %v161 = vpop.f32.mrb[0].mxu0
    %v162 = vadd.f32 0.0, %v161
    %v163 = vpop.f32.mrb[0].mxu0
    %164 = vmatprep.mubr.f32.mxu0 0.0
    %165 = vmatmul.mubr.f32.gmra.mrb[0].mxu0 %v67
    %v166 = vpop.f32.mrb[0].mxu0
    %v167 = vadd.f32 0.0, %v166
    %v168 = vpop.f32.mrb[0].mxu0
    %169 = vmatprep.mubr.f32.mxu0 0.0
    %170 = vmatmul.mubr.f32.gmra.mrb[0].mxu0 %v70
    %v171 = vpop.f32.mrb[0].mxu0
    %v172 = vadd.f32 0.0, %v171
    %v173 = vpop.f32.mrb[0].mxu0
    %174 = vmatprep.mubr.f32.mxu0 0.0
    %175 = vmatmul.mubr.f32.gmra.mrb[0].mxu0 %v73
    %v176 = vpop.f32.mrb[0].mxu0
    %v177 = vadd.f32 0.0, %v176
    %v178 = vpop.f32.mrb[0].mxu0
    %179 = vmatprep.mubr.f32.mxu0 0.0
    %180 = vmatmul.mubr.f32.gmra.mrb[0].mxu0 %v76
    %v181 = vpop.f32.mrb[0].mxu0
    %v182 = vadd.f32 0.0, %v181
    %v183 = vpop.f32.mrb[0].mxu0
    %184 = vmatprep.mubr.f32.mxu0 0.0
    %185 = vmatmul.mubr.f32.gmra.mrb[0].mxu0 %v79
    %v186 = vpop.f32.mrb[0].mxu0
    %v187 = vadd.f32 0.0, %v186
    %v188 = vpop.f32.mrb[0].mxu0
    %189 = vdwg.mxu0
    %190 = vmatprep.subr.mxu0 0.0
    %191 = vmatpush1.msra.mxu0 %v31
    %192 = vmatprep.subr.mxu0 0.0
    %193 = vmatpush1.msra.mxu0 %v32
    %194 = vmatprep.subr.mxu0 0.0
    %195 = vmatpush1.msra.mxu0 %v33
    %196 = vmatprep.subr.mxu0 0.0
    %197 = vmatpush1.msra.mxu0 %v34
    %198 = vmatprep.subr.mxu0 0.0
    %199 = vmatpush1.msra.mxu0 %v35
    %200 = vmatprep.subr.mxu0 0.0
    %201 = vmatpush1.msra.mxu0 %v36
    %202 = vmatprep.subr.mxu0 0.0
    %203 = vmatpush1.msra.mxu0 %v37
    %204 = vmatprep.subr.mxu0 0.0
    %205 = vmatpush1.msra.mxu0 %v38
    %206 = vmatprep.subr.mxu0 0.0
    %207 = vmatpush1.msra.mxu0 %v39
    %208 = vmatprep.subr.mxu0 0.0
    %209 = vmatpush1.msra.mxu0 %v40
    %210 = vmatprep.subr.mxu0 0.0
    %211 = vmatpush1.msra.mxu0 %v41
    %212 = vmatprep.subr.mxu0 0.0
    %213 = vmatpush1.msra.mxu0 %v42
    %214 = vmatprep.subr.mxu0 0.0
    %215 = vmatpush1.msra.mxu0 %v43
    %216 = vmatprep.subr.mxu0 0.0
    %217 = vmatpush1.msra.mxu0 %v44
    %218 = vmatprep.subr.mxu0 0.0
    %219 = vmatpush1.msra.mxu0 %v45
    %220 = vmatprep.subr.mxu0 0.0
    %221 = vmatpush1.msra.mxu0 %v46
    %222 = vmatprep.subr.mxu0 0.0
    %223 = vmatpush1.msra.mxu0 0.0
    %224 = vmatprep.subr.mxu0 0.0
    %225 = vmatpush1.msra.mxu0 0.0
    %226 = vmatprep.subr.mxu0 0.0
    %227 = vmatpush1.msra.mxu0 0.0
    %228 = vmatprep.subr.mxu0 0.0
    %229 = vmatpush1.msra.mxu0 0.0
    %230 = vmatprep.subr.mxu0 0.0
    %231 = vmatpush1.msra.mxu0 0.0
    %232 = vmatprep.subr.mxu0 0.0
    %233 = vmatpush1.msra.mxu0 0.0
    %234 = vmatprep.subr.mxu0 0.0
    %235 = vmatpush1.msra.mxu0 0.0
    %236 = vmatprep.subr.mxu0 0.0
    %237 = vmatpush1.msra.mxu0 0.0
    %238 = vmatprep.subr.mxu0 0.0
    %239 = vmatpush1.msra.mxu0 0.0
    %240 = vmatprep.subr.mxu0 0.0
    %241 = vmatpush1.msra.mxu0 0.0
    %242 = vmatprep.subr.mxu0 0.0
    %243 = vmatpush1.msra.mxu0 0.0
    %244 = vmatprep.subr.mxu0 0.0
    %245 = vmatpush1.msra.mxu0 0.0
    %246 = vmatprep.subr.mxu0 0.0
    %247 = vmatpush1.msra.mxu0 0.0
    %248 = vmatprep.subr.mxu0 0.0
    %249 = vmatpush1.msra.mxu0 0.0
    %250 = vmatprep.subr.mxu0 0.0
    %251 = vmatpush1.msra.mxu0 0.0
    %252 = vmatprep.subr.mxu0 0.0
    %253 = vmatpush1.msra.mxu0 0.0
    %254 = vmatprep.mubr.f32.mxu0 0.0
    %255 = vmatmul.mubr.f32.gmra.mrb[0].mxu0 %v152
    %v256 = vpop.f32.mrb[0].mxu0
    %v257 = vadd.f32 0.0, %v256
    %v258 = vpop.f32.mrb[0].mxu0
    %259 = vmatprep.mubr.f32.mxu0 0.0
    %260 = vmatmul.mubr.f32.gmra.mrb[0].mxu0 %v157
    %v261 = vpop.f32.mrb[0].mxu0
    %v262 = vadd.f32 0.0, %v261
    %v263 = vpop.f32.mrb[0].mxu0
    %264 = vmatprep.mubr.f32.mxu0 0.0
    %265 = vmatmul.mubr.f32.gmra.mrb[0].mxu0 %v162
    %v266 = vpop.f32.mrb[0].mxu0
    %v267 = vadd.f32 0.0, %v266
    %v268 = vpop.f32.mrb[0].mxu0
    %269 = vmatprep.mubr.f32.mxu0 0.0
    %270 = vmatmul.mubr.f32.gmra.mrb[0].mxu0 %v167
    %v271 = vpop.f32.mrb[0].mxu0
    %v272 = vadd.f32 0.0, %v271
    %v273 = vpop.f32.mrb[0].mxu0
    %274 = vmatprep.mubr.f32.mxu0 0.0
    %275 = vmatmul.mubr.f32.gmra.mrb[0].mxu0 %v172
    %v276 = vpop.f32.mrb[0].mxu0
    %v277 = vadd.f32 0.0, %v276
    %v278 = vpop.f32.mrb[0].mxu0
    %279 = vmatprep.mubr.f32.mxu0 0.0
    %280 = vmatmul.mubr.f32.gmra.mrb[0].mxu0 %v177
    %v281 = vpop.f32.mrb[0].mxu0
    %v282 = vadd.f32 0.0, %v281
    %v283 = vpop.f32.mrb[0].mxu0
    %284 = vmatprep.mubr.f32.mxu0 0.0
    %285 = vmatmul.mubr.f32.gmra.mrb[0].mxu0 %v182
    %v286 = vpop.f32.mrb[0].mxu0
    %v287 = vadd.f32 0.0, %v286
    %v288 = vpop.f32.mrb[0].mxu0
    %289 = vmatprep.mubr.f32.mxu0 0.0
    %290 = vmatmul.mubr.f32.gmra.mrb[0].mxu0 %v187
    %v291 = vpop.f32.mrb[0].mxu0
    %v292 = vadd.f32 0.0, %v291
    %v293 = vpop.f32.mrb[0].mxu0
    %294 = vdwg.mxu0
    %vm295 = vcmask 523264
    %v297 = vsel %vm295, %v47, 0
    %299 = vmatprep.subr.mxu0 0.0
    %300 = vmatpush1.msra.mxu0 %v257
    %301 = vmatprep.subr.mxu0 0.0
    %302 = vmatpush1.msra.mxu0 %v262
    %303 = vmatprep.subr.mxu0 0.0
    %304 = vmatpush1.msra.mxu0 %v267
    %305 = vmatprep.subr.mxu0 0.0
    %306 = vmatpush1.msra.mxu0 %v272
    %307 = vmatprep.subr.mxu0 0.0
    %308 = vmatpush1.msra.mxu0 %v277
    %309 = vmatprep.subr.mxu0 0.0
    %310 = vmatpush1.msra.mxu0 %v282
    %311 = vmatprep.subr.mxu0 0.0
    %312 = vmatpush1.msra.mxu0 %v287
    %313 = vmatprep.subr.mxu0 0.0
    %314 = vmatpush1.msra.mxu0 %v292
    %315 = vmatprep.subr.mxu0 0.0
    %316 = vmatpush1.msra.mxu0 0.0
    %317 = vmatprep.subr.mxu0 0.0
    %318 = vmatpush1.msra.mxu0 0.0
    %319 = vmatprep.subr.mxu0 0.0
    %320 = vmatpush1.msra.mxu0 0.0
    %321 = vmatprep.subr.mxu0 0.0
    %322 = vmatpush1.msra.mxu0 0.0
    %323 = vmatprep.subr.mxu0 0.0
    %324 = vmatpush1.msra.mxu0 0.0
    %325 = vmatprep.subr.mxu0 0.0
    %326 = vmatpush1.msra.mxu0 0.0
    %327 = vmatprep.subr.mxu0 0.0
    %328 = vmatpush1.msra.mxu0 0.0
    %329 = vmatprep.subr.mxu0 0.0
    %330 = vmatpush1.msra.mxu0 0.0
    %331 = vmatprep.subr.mxu0 0.0
    %332 = vmatpush1.msra.mxu0 0.0
    %333 = vmatprep.subr.mxu0 0.0
    %334 = vmatpush1.msra.mxu0 0.0
    %335 = vmatprep.subr.mxu0 0.0
    %336 = vmatpush1.msra.mxu0 0.0
    %337 = vmatprep.subr.mxu0 0.0
    %338 = vmatpush1.msra.mxu0 0.0
    %339 = vmatprep.subr.mxu0 0.0
    %340 = vmatpush1.msra.mxu0 0.0
    %341 = vmatprep.subr.mxu0 0.0
    %342 = vmatpush1.msra.mxu0 0.0
    %343 = vmatprep.subr.mxu0 0.0
    %344 = vmatpush1.msra.mxu0 0.0
    %345 = vmatprep.subr.mxu0 0.0
    %346 = vmatpush1.msra.mxu0 0.0
    %347 = vmatprep.subr.mxu0 0.0
    %348 = vmatpush1.msra.mxu0 0.0
    %349 = vmatprep.subr.mxu0 0.0
    %350 = vmatpush1.msra.mxu0 0.0
    %351 = vmatprep.subr.mxu0 0.0
    %352 = vmatpush1.msra.mxu0 0.0
    %353 = vmatprep.subr.mxu0 0.0
    %354 = vmatpush1.msra.mxu0 0.0
    %355 = vmatprep.subr.mxu0 0.0
    %356 = vmatpush1.msra.mxu0 0.0
    %357 = vmatprep.subr.mxu0 0.0
    %358 = vmatpush1.msra.mxu0 0.0
    %359 = vmatprep.subr.mxu0 0.0
    %360 = vmatpush1.msra.mxu0 0.0
    %361 = vmatprep.subr.mxu0 0.0
    %362 = vmatpush1.msra.mxu0 0.0
    %363 = vmatprep.mubr.f32.mxu0 0.0
    %364 = vmatmul.mubr.f32.gmra.mrb[0].mxu0 %v297
    %v365 = vpop.f32.mrb[0].mxu0
    %v366 = vadd.f32 0.0, %v365
    %v367 = vpop.f32.mrb[0].mxu0
    %368 = vdwg.mxu0
    %v369 = vmul.f32 %v366, 0.00390625
    %vm371 = vcmask 1040384
    %v372 = vrot.slane %v29, 7
    %v373 = vrot.slane %v30, 7
    %v374 = vsel %vm371, %v372, %v373
    %vm375 = vcmask 31744
    %v377 = vsel %vm375, %v369, 0
    %vm379 = vcmask 1043456
    %v380 = vsel %vm379, %v374, 0
    %382 = vmatprep.subr.mxu0 0.0
    %383 = vmatpush1.msra.mxu0 %v380
    %384 = vmatprep.subr.mxu0 0.0
    %385 = vmatpush1.msra.mxu0 0.0
    %386 = vmatprep.subr.mxu0 0.0
    %387 = vmatpush1.msra.mxu0 0.0
    %388 = vmatprep.subr.mxu0 0.0
    %389 = vmatpush1.msra.mxu0 0.0
    %390 = vmatprep.subr.mxu0 0.0
    %391 = vmatpush1.msra.mxu0 0.0
    %392 = vmatprep.subr.mxu0 0.0
    %393 = vmatpush1.msra.mxu0 0.0
    %394 = vmatprep.subr.mxu0 0.0
    %395 = vmatpush1.msra.mxu0 0.0
    %396 = vmatprep.subr.mxu0 0.0
    %397 = vmatpush1.msra.mxu0 0.0
    %398 = vmatprep.subr.mxu0 0.0
    %399 = vmatpush1.msra.mxu0 0.0
    %400 = vmatprep.subr.mxu0 0.0
    %401 = vmatpush1.msra.mxu0 0.0
    %402 = vmatprep.subr.mxu0 0.0
    %403 = vmatpush1.msra.mxu0 0.0
    %404 = vmatprep.subr.mxu0 0.0
    %405 = vmatpush1.msra.mxu0 0.0
    %406 = vmatprep.subr.mxu0 0.0
    %407 = vmatpush1.msra.mxu0 0.0
    %408 = vmatprep.subr.mxu0 0.0
    %409 = vmatpush1.msra.mxu0 0.0
    %410 = vmatprep.subr.mxu0 0.0
    %411 = vmatpush1.msra.mxu0 0.0
    %412 = vmatprep.subr.mxu0 0.0
    %413 = vmatpush1.msra.mxu0 0.0
    %414 = vmatprep.subr.mxu0 0.0
    %415 = vmatpush1.msra.mxu0 0.0
    %416 = vmatprep.subr.mxu0 0.0
    %417 = vmatpush1.msra.mxu0 0.0
    %418 = vmatprep.subr.mxu0 0.0
    %419 = vmatpush1.msra.mxu0 0.0
    %420 = vmatprep.subr.mxu0 0.0
    %421 = vmatpush1.msra.mxu0 0.0
    %422 = vmatprep.subr.mxu0 0.0
    %423 = vmatpush1.msra.mxu0 0.0
    %424 = vmatprep.subr.mxu0 0.0
    %425 = vmatpush1.msra.mxu0 0.0
    %426 = vmatprep.subr.mxu0 0.0
    %427 = vmatpush1.msra.mxu0 0.0
    %428 = vmatprep.subr.mxu0 0.0
    %429 = vmatpush1.msra.mxu0 0.0
    %430 = vmatprep.subr.mxu0 0.0
    %431 = vmatpush1.msra.mxu0 0.0
    %432 = vmatprep.subr.mxu0 0.0
    %433 = vmatpush1.msra.mxu0 0.0
    %434 = vmatprep.subr.mxu0 0.0
    %435 = vmatpush1.msra.mxu0 0.0
    %436 = vmatprep.subr.mxu0 0.0
    %437 = vmatpush1.msra.mxu0 0.0
    %438 = vmatprep.subr.mxu0 0.0
    %439 = vmatpush1.msra.mxu0 0.0
    %440 = vmatprep.subr.mxu0 0.0
    %441 = vmatpush1.msra.mxu0 0.0
    %442 = vmatprep.subr.mxu0 0.0
    %443 = vmatpush1.msra.mxu0 0.0
    %444 = vmatprep.subr.mxu0 0.0
    %445 = vmatpush1.msra.mxu0 0.0
    %446 = vmatprep.mubr.f32.mxu0 0.0
    %447 = vmatmul.mubr.f32.gmra.mrb[0].mxu0 %v377
    %v448 = vpop.f32.mrb[0].mxu0
    %v449 = vadd.f32 0.0, %v448
    %v450 = vpop.f32.mrb[0].mxu0
    %451 = vdwg.mxu0
    %vm452 = vcmask 64512
    %v454 = vsel %vm452, %v48, 0
    %v457 = vsel %vm452, %v49, 0
    %v460 = vsel %vm452, %v50, 0
    %v463 = vsel %vm452, %v51, 0
    %v466 = vsel %vm452, %v52, 0
    %v469 = vsel %vm452, %v53, 0
    %v472 = vsel %vm452, %v54, 0
    %v475 = vsel %vm452, %v55, 0
    %477 = vmatprep.subr.mxu0 0.0
    %478 = vmatpush1.msra.mxu0 %v449
    %479 = vmatprep.subr.mxu0 0.0
    %480 = vmatpush1.msra.mxu0 0.0
    %481 = vmatprep.subr.mxu0 0.0
    %482 = vmatpush1.msra.mxu0 0.0
    %483 = vmatprep.subr.mxu0 0.0
    %484 = vmatpush1.msra.mxu0 0.0
    %485 = vmatprep.subr.mxu0 0.0
    %486 = vmatpush1.msra.mxu0 0.0
    %487 = vmatprep.subr.mxu0 0.0
    %488 = vmatpush1.msra.mxu0 0.0
    %489 = vmatprep.subr.mxu0 0.0
    %490 = vmatpush1.msra.mxu0 0.0
    %491 = vmatprep.subr.mxu0 0.0
    %492 = vmatpush1.msra.mxu0 0.0
    %493 = vmatprep.subr.mxu0 0.0
    %494 = vmatpush1.msra.mxu0 0.0
    %495 = vmatprep.subr.mxu0 0.0
    %496 = vmatpush1.msra.mxu0 0.0
    %497 = vmatprep.subr.mxu0 0.0
    %498 = vmatpush1.msra.mxu0 0.0
    %499 = vmatprep.subr.mxu0 0.0
    %500 = vmatpush1.msra.mxu0 0.0
    %501 = vmatprep.subr.mxu0 0.0
    %502 = vmatpush1.msra.mxu0 0.0
    %503 = vmatprep.subr.mxu0 0.0
    %504 = vmatpush1.msra.mxu0 0.0
    %505 = vmatprep.subr.mxu0 0.0
    %506 = vmatpush1.msra.mxu0 0.0
    %507 = vmatprep.subr.mxu0 0.0
    %508 = vmatpush1.msra.mxu0 0.0
    %509 = vmatprep.subr.mxu0 0.0
    %510 = vmatpush1.msra.mxu0 0.0
    %511 = vmatprep.subr.mxu0 0.0
    %512 = vmatpush1.msra.mxu0 0.0
    %513 = vmatprep.subr.mxu0 0.0
    %514 = vmatpush1.msra.mxu0 0.0
    %515 = vmatprep.subr.mxu0 0.0
    %516 = vmatpush1.msra.mxu0 0.0
    %517 = vmatprep.subr.mxu0 0.0
    %518 = vmatpush1.msra.mxu0 0.0
    %519 = vmatprep.subr.mxu0 0.0
    %520 = vmatpush1.msra.mxu0 0.0
    %521 = vmatprep.subr.mxu0 0.0
    %522 = vmatpush1.msra.mxu0 0.0
    %523 = vmatprep.subr.mxu0 0.0
    %524 = vmatpush1.msra.mxu0 0.0
    %525 = vmatprep.subr.mxu0 0.0
    %526 = vmatpush1.msra.mxu0 0.0
    %527 = vmatprep.subr.mxu0 0.0
    %528 = vmatpush1.msra.mxu0 0.0
    %529 = vmatprep.subr.mxu0 0.0
    %530 = vmatpush1.msra.mxu0 0.0
    %531 = vmatprep.subr.mxu0 0.0
    %532 = vmatpush1.msra.mxu0 0.0
    %533 = vmatprep.subr.mxu0 0.0
    %534 = vmatpush1.msra.mxu0 0.0
    %535 = vmatprep.subr.mxu0 0.0
    %536 = vmatpush1.msra.mxu0 0.0
    %537 = vmatprep.subr.mxu0 0.0
    %538 = vmatpush1.msra.mxu0 0.0
    %539 = vmatprep.subr.mxu0 0.0
    %540 = vmatpush1.msra.mxu0 0.0
    %541 = vmatprep.mubr.f32.mxu0 0.0
    %542 = vmatmul.mubr.f32.gmra.mrb[0].mxu0 %v454
    %v543 = vpop.f32.mrb[0].mxu0
    %v544 = vadd.f32 0.0, %v543
    %v545 = vpop.f32.mrb[0].mxu0
    %546 = vmatprep.mubr.f32.mxu0 0.0
    %547 = vmatmul.mubr.f32.gmra.mrb[0].mxu0 %v457
    %v548 = vpop.f32.mrb[0].mxu0
    %v549 = vadd.f32 0.0, %v548
    %v550 = vpop.f32.mrb[0].mxu0
    %551 = vmatprep.mubr.f32.mxu0 0.0
    %552 = vmatmul.mubr.f32.gmra.mrb[0].mxu0 %v460
    %v553 = vpop.f32.mrb[0].mxu0
    %v554 = vadd.f32 0.0, %v553
    %v555 = vpop.f32.mrb[0].mxu0
    %556 = vmatprep.mubr.f32.mxu0 0.0
    %557 = vmatmul.mubr.f32.gmra.mrb[0].mxu0 %v463
    %v558 = vpop.f32.mrb[0].mxu0
    %v559 = vadd.f32 0.0, %v558
    %v560 = vpop.f32.mrb[0].mxu0
    %561 = vmatprep.mubr.f32.mxu0 0.0
    %562 = vmatmul.mubr.f32.gmra.mrb[0].mxu0 %v466
    %v563 = vpop.f32.mrb[0].mxu0
    %v564 = vadd.f32 0.0, %v563
    %v565 = vpop.f32.mrb[0].mxu0
    %566 = vmatprep.mubr.f32.mxu0 0.0
    %567 = vmatmul.mubr.f32.gmra.mrb[0].mxu0 %v469
    %v568 = vpop.f32.mrb[0].mxu0
    %v569 = vadd.f32 0.0, %v568
    %v570 = vpop.f32.mrb[0].mxu0
    %571 = vmatprep.mubr.f32.mxu0 0.0
    %572 = vmatmul.mubr.f32.gmra.mrb[0].mxu0 %v472
    %v573 = vpop.f32.mrb[0].mxu0
    %v574 = vadd.f32 0.0, %v573
    %v575 = vpop.f32.mrb[0].mxu0
    %576 = vmatprep.mubr.f32.mxu0 0.0
    %577 = vmatmul.mubr.f32.gmra.mrb[0].mxu0 %v475
    %v578 = vpop.f32.mrb[0].mxu0
    %v579 = vadd.f32 0.0, %v578
    %v580 = vpop.f32.mrb[0].mxu0
    %581 = vdwg.mxu0
    %v582 = vsub.f32 %v152, %v544
    %v583 = vsub.f32 %v157, %v549
    %v584 = vsub.f32 %v162, %v554
    %v585 = vsub.f32 %v167, %v559
    %v586 = vsub.f32 %v172, %v564
    %v587 = vsub.f32 %v177, %v569
    %v588 = vsub.f32 %v182, %v574
    %v589 = vsub.f32 %v187, %v579
    %v590 = vmul.f32 %v582, %v582
    %v591 = vmul.f32 %v583, %v583
    %v592 = vmul.f32 %v584, %v584
    %v593 = vmul.f32 %v585, %v585
    %v594 = vmul.f32 %v586, %v586
    %v595 = vmul.f32 %v587, %v587
    %v596 = vmul.f32 %v588, %v588
    %v597 = vmul.f32 %v589, %v589
    %598 = vmatprep.subr.mxu0 0.0
    %599 = vmatpush1.msra.mxu0 %v31
    %600 = vmatprep.subr.mxu0 0.0
    %601 = vmatpush1.msra.mxu0 %v32
    %602 = vmatprep.subr.mxu0 0.0
    %603 = vmatpush1.msra.mxu0 %v33
    %604 = vmatprep.subr.mxu0 0.0
    %605 = vmatpush1.msra.mxu0 %v34
    %606 = vmatprep.subr.mxu0 0.0
    %607 = vmatpush1.msra.mxu0 %v35
    %608 = vmatprep.subr.mxu0 0.0
    %609 = vmatpush1.msra.mxu0 %v36
    %610 = vmatprep.subr.mxu0 0.0
    %611 = vmatpush1.msra.mxu0 %v37
    %612 = vmatprep.subr.mxu0 0.0
    %613 = vmatpush1.msra.mxu0 %v38
    %614 = vmatprep.subr.mxu0 0.0
    %615 = vmatpush1.msra.mxu0 %v39
    %616 = vmatprep.subr.mxu0 0.0
    %617 = vmatpush1.msra.mxu0 %v40
    %618 = vmatprep.subr.mxu0 0.0
    %619 = vmatpush1.msra.mxu0 %v41
    %620 = vmatprep.subr.mxu0 0.0
    %621 = vmatpush1.msra.mxu0 %v42
    %622 = vmatprep.subr.mxu0 0.0
    %623 = vmatpush1.msra.mxu0 %v43
    %624 = vmatprep.subr.mxu0 0.0
    %625 = vmatpush1.msra.mxu0 %v44
    %626 = vmatprep.subr.mxu0 0.0
    %627 = vmatpush1.msra.mxu0 %v45
    %628 = vmatprep.subr.mxu0 0.0
    %629 = vmatpush1.msra.mxu0 %v46
    %630 = vmatprep.subr.mxu0 0.0
    %631 = vmatpush1.msra.mxu0 0.0
    %632 = vmatprep.subr.mxu0 0.0
    %633 = vmatpush1.msra.mxu0 0.0
    %634 = vmatprep.subr.mxu0 0.0
    %635 = vmatpush1.msra.mxu0 0.0
    %636 = vmatprep.subr.mxu0 0.0
    %637 = vmatpush1.msra.mxu0 0.0
    %638 = vmatprep.subr.mxu0 0.0
    %639 = vmatpush1.msra.mxu0 0.0
    %640 = vmatprep.subr.mxu0 0.0
    %641 = vmatpush1.msra.mxu0 0.0
    %642 = vmatprep.subr.mxu0 0.0
    %643 = vmatpush1.msra.mxu0 0.0
    %644 = vmatprep.subr.mxu0 0.0
    %645 = vmatpush1.msra.mxu0 0.0
    %646 = vmatprep.subr.mxu0 0.0
    %647 = vmatpush1.msra.mxu0 0.0
    %648 = vmatprep.subr.mxu0 0.0
    %649 = vmatpush1.msra.mxu0 0.0
    %650 = vmatprep.subr.mxu0 0.0
    %651 = vmatpush1.msra.mxu0 0.0
    %652 = vmatprep.subr.mxu0 0.0
    %653 = vmatpush1.msra.mxu0 0.0
    %654 = vmatprep.subr.mxu0 0.0
    %655 = vmatpush1.msra.mxu0 0.0
    %656 = vmatprep.subr.mxu0 0.0
    %657 = vmatpush1.msra.mxu0 0.0
    %658 = vmatprep.subr.mxu0 0.0
    %659 = vmatpush1.msra.mxu0 0.0
    %660 = vmatprep.subr.mxu0 0.0
    %661 = vmatpush1.msra.mxu0 0.0
    %662 = vmatprep.mubr.f32.mxu0 0.0
    %663 = vmatmul.mubr.f32.gmra.mrb[0].mxu0 %v590
    %v664 = vpop.f32.mrb[0].mxu0
    %v665 = vadd.f32 0.0, %v664
    %v666 = vpop.f32.mrb[0].mxu0
    %667 = vmatprep.mubr.f32.mxu0 0.0
    %668 = vmatmul.mubr.f32.gmra.mrb[0].mxu0 %v591
    %v669 = vpop.f32.mrb[0].mxu0
    %v670 = vadd.f32 0.0, %v669
    %v671 = vpop.f32.mrb[0].mxu0
    %672 = vmatprep.mubr.f32.mxu0 0.0
    %673 = vmatmul.mubr.f32.gmra.mrb[0].mxu0 %v592
    %v674 = vpop.f32.mrb[0].mxu0
    %v675 = vadd.f32 0.0, %v674
    %v676 = vpop.f32.mrb[0].mxu0
    %677 = vmatprep.mubr.f32.mxu0 0.0
    %678 = vmatmul.mubr.f32.gmra.mrb[0].mxu0 %v593
    %v679 = vpop.f32.mrb[0].mxu0
    %v680 = vadd.f32 0.0, %v679
    %v681 = vpop.f32.mrb[0].mxu0
    %682 = vmatprep.mubr.f32.mxu0 0.0
    %683 = vmatmul.mubr.f32.gmra.mrb[0].mxu0 %v594
    %v684 = vpop.f32.mrb[0].mxu0
    %v685 = vadd.f32 0.0, %v684
    %v686 = vpop.f32.mrb[0].mxu0
    %687 = vmatprep.mubr.f32.mxu0 0.0
    %688 = vmatmul.mubr.f32.gmra.mrb[0].mxu0 %v595
    %v689 = vpop.f32.mrb[0].mxu0
    %v690 = vadd.f32 0.0, %v689
    %v691 = vpop.f32.mrb[0].mxu0
    %692 = vmatprep.mubr.f32.mxu0 0.0
    %693 = vmatmul.mubr.f32.gmra.mrb[0].mxu0 %v596
    %v694 = vpop.f32.mrb[0].mxu0
    %v695 = vadd.f32 0.0, %v694
    %v696 = vpop.f32.mrb[0].mxu0
    %697 = vmatprep.mubr.f32.mxu0 0.0
    %698 = vmatmul.mubr.f32.gmra.mrb[0].mxu0 %v597
    %v699 = vpop.f32.mrb[0].mxu0
    %v700 = vadd.f32 0.0, %v699
    %v701 = vpop.f32.mrb[0].mxu0
    %702 = vdwg.mxu0
    %703 = vmatprep.subr.mxu0 0.0
    %704 = vmatpush1.msra.mxu0 %v665
    %705 = vmatprep.subr.mxu0 0.0
    %706 = vmatpush1.msra.mxu0 %v670
    %707 = vmatprep.subr.mxu0 0.0
    %708 = vmatpush1.msra.mxu0 %v675
    %709 = vmatprep.subr.mxu0 0.0
    %710 = vmatpush1.msra.mxu0 %v680
    %711 = vmatprep.subr.mxu0 0.0
    %712 = vmatpush1.msra.mxu0 %v685
    %713 = vmatprep.subr.mxu0 0.0
    %714 = vmatpush1.msra.mxu0 %v690
    %715 = vmatprep.subr.mxu0 0.0
    %716 = vmatpush1.msra.mxu0 %v695
    %717 = vmatprep.subr.mxu0 0.0
    %718 = vmatpush1.msra.mxu0 %v700
    %719 = vmatprep.subr.mxu0 0.0
    %720 = vmatpush1.msra.mxu0 0.0
    %721 = vmatprep.subr.mxu0 0.0
    %722 = vmatpush1.msra.mxu0 0.0
    %723 = vmatprep.subr.mxu0 0.0
    %724 = vmatpush1.msra.mxu0 0.0
    %725 = vmatprep.subr.mxu0 0.0
    %726 = vmatpush1.msra.mxu0 0.0
    %727 = vmatprep.subr.mxu0 0.0
    %728 = vmatpush1.msra.mxu0 0.0
    %729 = vmatprep.subr.mxu0 0.0
    %730 = vmatpush1.msra.mxu0 0.0
    %731 = vmatprep.subr.mxu0 0.0
    %732 = vmatpush1.msra.mxu0 0.0
    %733 = vmatprep.subr.mxu0 0.0
    %734 = vmatpush1.msra.mxu0 0.0
    %735 = vmatprep.subr.mxu0 0.0
    %736 = vmatpush1.msra.mxu0 0.0
    %737 = vmatprep.subr.mxu0 0.0
    %738 = vmatpush1.msra.mxu0 0.0
    %739 = vmatprep.subr.mxu0 0.0
    %740 = vmatpush1.msra.mxu0 0.0
    %741 = vmatprep.subr.mxu0 0.0
    %742 = vmatpush1.msra.mxu0 0.0
    %743 = vmatprep.subr.mxu0 0.0
    %744 = vmatpush1.msra.mxu0 0.0
    %745 = vmatprep.subr.mxu0 0.0
    %746 = vmatpush1.msra.mxu0 0.0
    %747 = vmatprep.subr.mxu0 0.0
    %748 = vmatpush1.msra.mxu0 0.0
    %749 = vmatprep.subr.mxu0 0.0
    %750 = vmatpush1.msra.mxu0 0.0
    %751 = vmatprep.subr.mxu0 0.0
    %752 = vmatpush1.msra.mxu0 0.0
    %753 = vmatprep.subr.mxu0 0.0
    %754 = vmatpush1.msra.mxu0 0.0
    %755 = vmatprep.subr.mxu0 0.0
    %756 = vmatpush1.msra.mxu0 0.0
    %757 = vmatprep.subr.mxu0 0.0
    %758 = vmatpush1.msra.mxu0 0.0
    %759 = vmatprep.subr.mxu0 0.0
    %760 = vmatpush1.msra.mxu0 0.0
    %761 = vmatprep.subr.mxu0 0.0
    %762 = vmatpush1.msra.mxu0 0.0
    %763 = vmatprep.subr.mxu0 0.0
    %764 = vmatpush1.msra.mxu0 0.0
    %765 = vmatprep.subr.mxu0 0.0
    %766 = vmatpush1.msra.mxu0 0.0
    %767 = vmatprep.mubr.f32.mxu0 0.0
    %768 = vmatmul.mubr.f32.gmra.mrb[0].mxu0 %v297
    %v769 = vpop.f32.mrb[0].mxu0
    %v770 = vadd.f32 0.0, %v769
    %v771 = vpop.f32.mrb[0].mxu0
    %772 = vdwg.mxu0
    %v773 = vmul.f32 %v770, 0.00390625
    %v775 = vsel %vm375, %v773, 0
    %777 = vmatprep.subr.mxu0 0.0
    %778 = vmatpush1.msra.mxu0 %v380
    %779 = vmatprep.subr.mxu0 0.0
    %780 = vmatpush1.msra.mxu0 0.0
    %781 = vmatprep.subr.mxu0 0.0
    %782 = vmatpush1.msra.mxu0 0.0
    %783 = vmatprep.subr.mxu0 0.0
    %784 = vmatpush1.msra.mxu0 0.0
    %785 = vmatprep.subr.mxu0 0.0
    %786 = vmatpush1.msra.mxu0 0.0
    %787 = vmatprep.subr.mxu0 0.0
    %788 = vmatpush1.msra.mxu0 0.0
    %789 = vmatprep.subr.mxu0 0.0
    %790 = vmatpush1.msra.mxu0 0.0
    %791 = vmatprep.subr.mxu0 0.0
    %792 = vmatpush1.msra.mxu0 0.0
    %793 = vmatprep.subr.mxu0 0.0
    %794 = vmatpush1.msra.mxu0 0.0
    %795 = vmatprep.subr.mxu0 0.0
    %796 = vmatpush1.msra.mxu0 0.0
    %797 = vmatprep.subr.mxu0 0.0
    %798 = vmatpush1.msra.mxu0 0.0
    %799 = vmatprep.subr.mxu0 0.0
    %800 = vmatpush1.msra.mxu0 0.0
    %801 = vmatprep.subr.mxu0 0.0
    %802 = vmatpush1.msra.mxu0 0.0
    %803 = vmatprep.subr.mxu0 0.0
    %804 = vmatpush1.msra.mxu0 0.0
    %805 = vmatprep.subr.mxu0 0.0
    %806 = vmatpush1.msra.mxu0 0.0
    %807 = vmatprep.subr.mxu0 0.0
    %808 = vmatpush1.msra.mxu0 0.0
    %809 = vmatprep.subr.mxu0 0.0
    %810 = vmatpush1.msra.mxu0 0.0
    %811 = vmatprep.subr.mxu0 0.0
    %812 = vmatpush1.msra.mxu0 0.0
    %813 = vmatprep.subr.mxu0 0.0
    %814 = vmatpush1.msra.mxu0 0.0
    %815 = vmatprep.subr.mxu0 0.0
    %816 = vmatpush1.msra.mxu0 0.0
    %817 = vmatprep.subr.mxu0 0.0
    %818 = vmatpush1.msra.mxu0 0.0
    %819 = vmatprep.subr.mxu0 0.0
    %820 = vmatpush1.msra.mxu0 0.0
    %821 = vmatprep.subr.mxu0 0.0
    %822 = vmatpush1.msra.mxu0 0.0
    %823 = vmatprep.subr.mxu0 0.0
    %824 = vmatpush1.msra.mxu0 0.0
    %825 = vmatprep.subr.mxu0 0.0
    %826 = vmatpush1.msra.mxu0 0.0
    %827 = vmatprep.subr.mxu0 0.0
    %828 = vmatpush1.msra.mxu0 0.0
    %829 = vmatprep.subr.mxu0 0.0
    %830 = vmatpush1.msra.mxu0 0.0
    %831 = vmatprep.subr.mxu0 0.0
    %832 = vmatpush1.msra.mxu0 0.0
    %833 = vmatprep.subr.mxu0 0.0
    %834 = vmatpush1.msra.mxu0 0.0
    %835 = vmatprep.subr.mxu0 0.0
    %836 = vmatpush1.msra.mxu0 0.0
    %837 = vmatprep.subr.mxu0 0.0
    %838 = vmatpush1.msra.mxu0 0.0
    %839 = vmatprep.subr.mxu0 0.0
    %840 = vmatpush1.msra.mxu0 0.0
    %841 = vmatprep.mubr.f32.mxu0 0.0
    %842 = vmatmul.mubr.f32.gmra.mrb[0].mxu0 %v775
    %v843 = vpop.f32.mrb[0].mxu0
    %v844 = vadd.f32 1e-05, %v843
    %v845 = vpop.f32.mrb[0].mxu0
    %846 = vdwg.mxu0
    %v847 = vrsqrt.pop %v844
    %v848 = vlaneseq
    %v849 = vshrl.u32 %v848, 7
    %v850 = vsub.s32 5, %v849
    %v851 = vrot.slane %v29, %v850
    %v852 = vmul.f32 %v847, %v851
    %853 = vmatprep.subr.mxu0 0.0
    %854 = vmatpush1.msra.mxu0 %v852
    %855 = vmatprep.subr.mxu0 0.0
    %856 = vmatpush1.msra.mxu0 0.0
    %857 = vmatprep.subr.mxu0 0.0
    %858 = vmatpush1.msra.mxu0 0.0
    %859 = vmatprep.subr.mxu0 0.0
    %860 = vmatpush1.msra.mxu0 0.0
    %861 = vmatprep.subr.mxu0 0.0
    %862 = vmatpush1.msra.mxu0 0.0
    %863 = vmatprep.subr.mxu0 0.0
    %864 = vmatpush1.msra.mxu0 0.0
    %865 = vmatprep.subr.mxu0 0.0
    %866 = vmatpush1.msra.mxu0 0.0
    %867 = vmatprep.subr.mxu0 0.0
    %868 = vmatpush1.msra.mxu0 0.0
    %869 = vmatprep.subr.mxu0 0.0
    %870 = vmatpush1.msra.mxu0 0.0
    %871 = vmatprep.subr.mxu0 0.0
    %872 = vmatpush1.msra.mxu0 0.0
    %873 = vmatprep.subr.mxu0 0.0
    %874 = vmatpush1.msra.mxu0 0.0
    %875 = vmatprep.subr.mxu0 0.0
    %876 = vmatpush1.msra.mxu0 0.0
    %877 = vmatprep.subr.mxu0 0.0
    %878 = vmatpush1.msra.mxu0 0.0
    %879 = vmatprep.subr.mxu0 0.0
    %880 = vmatpush1.msra.mxu0 0.0
    %881 = vmatprep.subr.mxu0 0.0
    %882 = vmatpush1.msra.mxu0 0.0
    %883 = vmatprep.subr.mxu0 0.0
    %884 = vmatpush1.msra.mxu0 0.0
    %885 = vmatprep.subr.mxu0 0.0
    %886 = vmatpush1.msra.mxu0 0.0
    %887 = vmatprep.subr.mxu0 0.0
    %888 = vmatpush1.msra.mxu0 0.0
    %889 = vmatprep.subr.mxu0 0.0
    %890 = vmatpush1.msra.mxu0 0.0
    %891 = vmatprep.subr.mxu0 0.0
    %892 = vmatpush1.msra.mxu0 0.0
    %893 = vmatprep.subr.mxu0 0.0
    %894 = vmatpush1.msra.mxu0 0.0
    %895 = vmatprep.subr.mxu0 0.0
    %896 = vmatpush1.msra.mxu0 0.0
    %897 = vmatprep.subr.mxu0 0.0
    %898 = vmatpush1.msra.mxu0 0.0
    %899 = vmatprep.subr.mxu0 0.0
    %900 = vmatpush1.msra.mxu0 0.0
    %901 = vmatprep.subr.mxu0 0.0
    %902 = vmatpush1.msra.mxu0 0.0
    %903 = vmatprep.subr.mxu0 0.0
    %904 = vmatpush1.msra.mxu0 0.0
    %905 = vmatprep.subr.mxu0 0.0
    %906 = vmatpush1.msra.mxu0 0.0
    %907 = vmatprep.subr.mxu0 0.0
    %908 = vmatpush1.msra.mxu0 0.0
    %909 = vmatprep.subr.mxu0 0.0
    %910 = vmatpush1.msra.mxu0 0.0
    %911 = vmatprep.subr.mxu0 0.0
    %912 = vmatpush1.msra.mxu0 0.0
    %913 = vmatprep.subr.mxu0 0.0
    %914 = vmatpush1.msra.mxu0 0.0
    %915 = vmatprep.subr.mxu0 0.0
    %916 = vmatpush1.msra.mxu0 0.0
    %917 = vmatprep.mubr.f32.mxu0 0.0
    %918 = vmatmul.mubr.f32.gmra.mrb[0].mxu0 %v454
    %v919 = vpop.f32.mrb[0].mxu0
    %v920 = vadd.f32 0.0, %v919
    %v921 = vpop.f32.mrb[0].mxu0
    %922 = vmatprep.mubr.f32.mxu0 0.0
    %923 = vmatmul.mubr.f32.gmra.mrb[0].mxu0 %v457
    %v924 = vpop.f32.mrb[0].mxu0
    %v925 = vadd.f32 0.0, %v924
    %v926 = vpop.f32.mrb[0].mxu0
    %927 = vmatprep.mubr.f32.mxu0 0.0
    %928 = vmatmul.mubr.f32.gmra.mrb[0].mxu0 %v460
    %v929 = vpop.f32.mrb[0].mxu0
    %v930 = vadd.f32 0.0, %v929
    %v931 = vpop.f32.mrb[0].mxu0
    %932 = vmatprep.mubr.f32.mxu0 0.0
    %933 = vmatmul.mubr.f32.gmra.mrb[0].mxu0 %v463
    %v934 = vpop.f32.mrb[0].mxu0
    %v935 = vadd.f32 0.0, %v934
    %v936 = vpop.f32.mrb[0].mxu0
    %937 = vmatprep.mubr.f32.mxu0 0.0
    %938 = vmatmul.mubr.f32.gmra.mrb[0].mxu0 %v466
    %v939 = vpop.f32.mrb[0].mxu0
    %v940 = vadd.f32 0.0, %v939
    %v941 = vpop.f32.mrb[0].mxu0
    %942 = vmatprep.mubr.f32.mxu0 0.0
    %943 = vmatmul.mubr.f32.gmra.mrb[0].mxu0 %v469
    %v944 = vpop.f32.mrb[0].mxu0
    %v945 = vadd.f32 0.0, %v944
    %v946 = vpop.f32.mrb[0].mxu0
    %947 = vmatprep.mubr.f32.mxu0 0.0
    %948 = vmatmul.mubr.f32.gmra.mrb[0].mxu0 %v472
    %v949 = vpop.f32.mrb[0].mxu0
    %v950 = vadd.f32 0.0, %v949
    %v951 = vpop.f32.mrb[0].mxu0
    %952 = vmatprep.mubr.f32.mxu0 0.0
    %953 = vmatmul.mubr.f32.gmra.mrb[0].mxu0 %v475
    %v954 = vpop.f32.mrb[0].mxu0
    %v955 = vadd.f32 0.0, %v954
    %v956 = vpop.f32.mrb[0].mxu0
    %957 = vdwg.mxu0
    %v958 = vmul.f32 %v582, %v920
    %v959 = vmul.f32 %v583, %v925
    %v960 = vmul.f32 %v584, %v930
    %v961 = vmul.f32 %v585, %v935
    %v962 = vmul.f32 %v586, %v940
    %v963 = vmul.f32 %v587, %v945
    %v964 = vmul.f32 %v588, %v950
    %v965 = vmul.f32 %v589, %v955
    %v966 = vlaneseq
    %v967 = vshrl.u32 %v966, 7
    %v968 = vsub.s32 6, %v967
    %v969 = vrot.slane %v29, %v968
    %v970 = vadd.f32 %v958, %v969
    %v971 = vadd.f32 %v959, %v969
    %v972 = vadd.f32 %v960, %v969
    %v973 = vadd.f32 %v961, %v969
    %v974 = vadd.f32 %v962, %v969
    %v975 = vadd.f32 %v963, %v969
    %v976 = vadd.f32 %v964, %v969
    %v977 = vadd.f32 %v965, %v969
    %978 = vst [vmem:[#allocation2] sm:$0xff] %v970
    %979 = vst [vmem:[#allocation2 + $0x8] sm:$0xff] %v971
    %980 = vst [vmem:[#allocation2 + $0x10] sm:$0xff] %v972
    %981 = vst [vmem:[#allocation2 + $0x18] sm:$0xff] %v973
    %982 = vst [vmem:[#allocation2 + $0x20] sm:$0xff] %v974
    %983 = vst [vmem:[#allocation2 + $0x28] sm:$0xff] %v975
    %984 = vst [vmem:[#allocation2 + $0x30] sm:$0xff] %v976
    %985 = vst [vmem:[#allocation2 + $0x38] sm:$0xff] %v977
    // Predicated region
    $region22: #{tpu_custom_call.1} parent=1 // pred_check
      _
    $region23: #{tpu_custom_call.1} parent=1 // pred_check_branch
      %987 = sbr.rel (0) target = $region25
    $region24: #{tpu_custom_call.1} parent=1 // pred_region
      %s989 = ssub.s32 1024, 1024
      %990 = vsyncadd [#allocation3], %s989
      %s991 = sshll.u32 [#allocation2], 4
      %s992 = int_to_ptr.vmem [resolvable:$true] %s991
      %997 = dma.vmem_to_hbm [thread:$0]  %s992, 1024, %s5, [#allocation3], 128, 128, 8
    $region25: #{tpu_custom_call.1} parent=1 // pred_fallthru
      _
    // Predicated region
    $region26: #{tpu_custom_call.1} parent=1 // pred_check
      _
    $region27: #{tpu_custom_call.1} parent=1 // pred_check_branch
      %999 = sbr.rel (0) target = $region29
    $region28: #{tpu_custom_call.1} parent=1 // pred_region
      %1000 = dma.done [#allocation3], 1024
    $region29: #{tpu_custom_call.1} parent=1 // pred_fallthru
      _
    %1001 = vsyncpa [#allocation3], 1

</llo_original>
